<compile_context>
chip_gen: v6e
topology: v6e:2x2x1
jax: 0.10.0
libtpu: 0.0.40
codegen_flags: <defaults>
</compile_context>

<pallas_src>
import functools

import jax
import jax.numpy as jnp
from jax.experimental import pallas as pl
from jax.experimental.pallas import tpu as pltpu


def _round_up(x, m):
    return ((x + m - 1) // m) * m


def _sublane(dtype):
    # 8 sublanes per vreg for 4-byte types; sub-32-bit dtypes pack along sublanes.
    return 8 * (4 // jnp.dtype(dtype).itemsize)


def _layernorm_store(y, v_ref, o_ref, *, eps, inv_d, pad_cols):
    """LayerNorm y (f32; pad feature columns exactly zero) and store to o_ref."""
    mean = jnp.sum(y, axis=-1, keepdims=True) * inv_d
    centered = y - mean
    ssq = jnp.sum(centered * centered, axis=-1, keepdims=True)
    if pad_cols:
        # Pad columns of y are exactly 0, so they contribute pad_cols * mean^2
        # to sum(centered^2); subtract it analytically (exact, no mask pass).
        ssq = ssq - pad_cols * (mean * mean)
    y_norm = centered * jax.lax.rsqrt(ssq * inv_d + eps)
    # v_ref rows: 0 = bias (consumed by caller), 1 = gamma, 2 = beta.
    o_ref[...] = (y_norm * v_ref[1:2, :] + v_ref[2:3, :]).astype(o_ref.dtype)


def _adapter_kernel_resident(x_ref, w_ref, v_ref, o_ref, *, eps, inv_d,
                             pad_cols, compute_dtype):
    # Full-E weight is VMEM-resident: no accumulator scratch needed.
    x = x_ref[...].astype(compute_dtype)
    y = jnp.dot(x, w_ref[...], preferred_element_type=jnp.float32)
    y = y + v_ref[0:1, :]
    _layernorm_store(y, v_ref, o_ref, eps=eps, inv_d=inv_d, pad_cols=pad_cols)


def _adapter_kernel_ktiled(x_ref, w_ref, v_ref, o_ref, acc_ref, *, eps, inv_d,
                           pad_cols, compute_dtype):
    k = pl.program_id(1)

    @pl.when(k == 0)
    def _():
        acc_ref[...] = jnp.zeros_like(acc_ref)

    x = x_ref[...].astype(compute_dtype)
    acc_ref[...] += jnp.dot(x, w_ref[...], preferred_element_type=jnp.float32)

    @pl.when(k == pl.num_programs(1) - 1)
    def _():
        y = acc_ref[...] + v_ref[0:1, :]
        _layernorm_store(y, v_ref, o_ref, eps=eps, inv_d=inv_d,
                         pad_cols=pad_cols)


def adapter_forward(x, w_t, b, gamma, beta, *, eps=1e-5, tile_m=None,
                    tile_k=None, compute_dtype=jnp.bfloat16):
    """Fused Linear + LayerNorm.

    x: (B, S, E) or (B, E); w_t: (E, D) (transposed PyTorch weight);
    b/gamma/beta: (D,). Returns (B, S, D) (S = 1 for 2-D x).
    """
    if x.ndim == 2:
        x = x[:, None, :]                                    # unsqueeze(1)
    B, S, E = x.shape
    E_w, D = w_t.shape
    assert E_w == E, (E_w, E)
    out_dtype = x.dtype

    M = B * S
    x2 = x.reshape(M, E)

    x_bytes = jnp.dtype(x.dtype).itemsize
    c_bytes = jnp.dtype(compute_dtype).itemsize
    o_bytes = jnp.dtype(out_dtype).itemsize

    try:
        phys_vmem = pltpu.get_tpu_info().vmem_capacity_bytes
    except Exception:
        phys_vmem = 64 << 20                                 # conservative (v7x)

    # Lane-dense output: pad feature dim to a multiple of 128.
    D_pad = _round_up(D, 128)
    pad_cols = D_pad - D

    # Row tile: aligned to the strictest sublane packing among input, compute
    # and output dtypes; default size derived from physical VMEM.
    row_align = max(_sublane(x.dtype), _sublane(compute_dtype),
                    _sublane(out_dtype))
    if tile_m is None:
        tile_m = 512 if phys_vmem >= (96 << 20) else 256
    tm = max(row_align, min(_round_up(tile_m, row_align),
                            _round_up(M, row_align)))

    # Weight residency: keep the full (E, D_pad) weight in VMEM (single
    # buffered) whenever it fits ~3/8 of physical VMEM; K-tile otherwise,
    # or when the caller explicitly requests a smaller tile_k.
    w_full_bytes = E * D_pad * c_bytes
    resident_budget = (phys_vmem * 3) // 8
    k_tiled = (w_full_bytes > resident_budget) or (
        tile_k is not None and tile_k < E)

    if k_tiled:
        req_tk = 2048 if tile_k is None else tile_k
        # Largest 128-multiple chunk whose double-buffered weight tile fits
        # ~1/4 of physical VMEM.
        fit_tk = max(128,
                     ((phys_vmem // 4) // (2 * D_pad * c_bytes)) // 128 * 128)
        tk = max(128, min(_round_up(req_tk, 128), _round_up(E, 128), fit_tk))
        E_pad = _round_up(E, tk)
        num_k = E_pad // tk
    else:
        tk = E
        E_pad = E
        num_k = 1

    def _vmem_needed(tm_):
        small = 8 * D_pad * 4                        # (3, D_pad) vecs, padded
        if k_tiled:
            return (2 * tm_ * tk * x_bytes + 2 * tk * D_pad * c_bytes
                    + 2 * tm_ * D_pad * o_bytes + tm_ * D_pad * 4 + small)
        return (2 * tm_ * E_pad * x_bytes + E_pad * D_pad * c_bytes
                + 2 * tm_ * D_pad * o_bytes + small)

    # Shrink the row tile if the working set approaches physical VMEM
    # (matters on v7x's 64 MiB per-TC VMEM with large D_pad).
    while _vmem_needed(tm) > (phys_vmem * 5) // 8 and tm > row_align:
        tm = max(row_align, _round_up(tm // 2, row_align))

    M_pad = _round_up(M, tm)
    # Guarantee >= 2 row tiles when possible so both v7x TensorCores get work.
    if M_pad // tm < 2:
        tm_half = max(row_align, _round_up(tm // 2, row_align))
        if tm_half < tm and _round_up(M, tm_half) // tm_half >= 2:
            tm = tm_half
            M_pad = _round_up(M, tm)

    # Zero-pad only when needed (zero pads keep the math exact).  x keeps its
    # native dtype and is cast to compute_dtype on the VPU inside the kernel.
    if M_pad != M or E_pad != E:
        x2 = jnp.pad(x2, ((0, M_pad - M), (0, E_pad - E)))
    w_p = w_t if (E_pad == E and D_pad == D) else jnp.pad(
        w_t, ((0, E_pad - E), (0, D_pad - D)))
    w_p = w_p.astype(compute_dtype)                  # one-time parameter cast
    vecs = jnp.stack([b, gamma, beta]).astype(jnp.float32)   # (3, D)
    if D_pad != D:
        vecs = jnp.pad(vecs, ((0, 0), (0, D_pad - D)))

    num_m = M_pad // tm
    vmem_needed = _vmem_needed(tm)
    vmem_limit = int(min(max(2 * vmem_needed, 32 << 20), (phys_vmem * 3) // 4))

    w_hbm_reads = 1 if num_k == 1 else num_m         # K-tiled re-streams weight
    cost = pl.CostEstimate(
        flops=2 * M_pad * E_pad * D_pad + 10 * M_pad * D_pad,
        transcendentals=M_pad,
        bytes_accessed=(M_pad * E_pad * x_bytes
                        + w_hbm_reads * E_pad * D_pad * c_bytes
                        + M_pad * D_pad * o_bytes + 3 * D_pad * 4),
    )

    if not k_tiled:
        kernel = functools.partial(_adapter_kernel_resident, eps=eps,
                                   inv_d=1.0 / D, pad_cols=pad_cols,
                                   compute_dtype=compute_dtype)
        grid_spec = pltpu.PrefetchScalarGridSpec(
            num_scalar_prefetch=0,
            grid=(num_m,),
            in_specs=[
                pl.BlockSpec((tm, E_pad), lambda i: (i, 0)),       # x row tile
                pl.BlockSpec((E_pad, D_pad), lambda i: (0, 0),     # resident W
                             pipeline_mode=pl.Buffered(1)),
                pl.BlockSpec((3, D_pad), lambda i: (0, 0),         # b/γ/β stack
                             pipeline_mode=pl.Buffered(1)),
            ],
            out_specs=pl.BlockSpec((tm, D_pad), lambda i: (i, 0)),
        )
        dim_sem = ("parallel",)
    else:
        kernel = functools.partial(_adapter_kernel_ktiled, eps=eps,
                                   inv_d=1.0 / D, pad_cols=pad_cols,
                                   compute_dtype=compute_dtype)
        grid_spec = pltpu.PrefetchScalarGridSpec(
            num_scalar_prefetch=0,
            grid=(num_m, num_k),
            in_specs=[
                pl.BlockSpec((tm, tk), lambda i, k: (i, k)),        # x tile
                pl.BlockSpec((tk, D_pad), lambda i, k: (k, 0)),     # W k-chunk
                pl.BlockSpec((3, D_pad), lambda i, k: (0, 0),       # b/γ/β
                             pipeline_mode=pl.Buffered(1)),
            ],
            out_specs=pl.BlockSpec((tm, D_pad), lambda i, k: (i, 0)),
            scratch_shapes=[pltpu.VMEM((tm, D_pad), jnp.float32)],
        )
        dim_sem = ("parallel", "arbitrary")

    out = pl.pallas_call(
        kernel,
        out_shape=jax.ShapeDtypeStruct((M_pad, D_pad), out_dtype),
        grid_spec=grid_spec,
        compiler_params=pltpu.CompilerParams(
            dimension_semantics=dim_sem,
            vmem_limit_bytes=vmem_limit,
        ),
        cost_estimate=cost,
    )(x2, w_p, vecs)

    if M_pad != M or D_pad != D:
        out = out[:M, :D]
    return out.reshape(B, S, D)


def adapter_reference(x, w_t, b, gamma, beta, *, eps=1e-5, compute_dtype=None):
    if x.ndim == 2:
        x = x[:, None, :]
    xr, wr = (x, w_t) if compute_dtype is None else (
        x.astype(compute_dtype), w_t.astype(compute_dtype))
    y = jnp.einsum("bse,ed->bsd", xr, wr,
                   preferred_element_type=jnp.float32) + b
    mean = jnp.mean(y, axis=-1, keepdims=True)
    var = jnp.mean((y - mean) ** 2, axis=-1, keepdims=True)
    out = (y - mean) * jax.lax.rsqrt(var + eps) * gamma + beta
    return out.astype(x.dtype)


if __name__ == "__main__":
    key = jax.random.PRNGKey(0)
    k_x, k_w, k_b, k_x2 = jax.random.split(key, 4)

    B, S, E, D = 2, 8, 32, 32    # batch, seq, encoder_dim, decoder_dim

    x = jax.random.normal(k_x, (B, S, E), dtype=jnp.float32)
    bound = 1.0 / (E ** 0.5)
    w = jax.random.uniform(k_w, (D, E), minval=-bound, maxval=bound,
                           dtype=jnp.float32)              # PyTorch weight (D, E)
    w_t = w.T                                              # kernel uses (E, D)
    b = jax.random.uniform(k_b, (D,), minval=-bound, maxval=bound,
                           dtype=jnp.float32)
    gamma = jnp.ones((D,), dtype=jnp.float32)              # LayerNorm defaults
    beta = jnp.zeros((D,), dtype=jnp.float32)

    # 1) Default path: resident weight, bf16 matmul inputs, f32 LayerNorm.
    out = jax.block_until_ready(adapter_forward(x, w_t, b, gamma, beta))
    ref_bf16 = adapter_reference(x, w_t, b, gamma, beta,
                                 compute_dtype=jnp.bfloat16)
    assert out.shape == (B, S, D), out.shape
    assert jnp.allclose(out, ref_bf16, atol=2e-2, rtol=2e-2), \
        float(jnp.max(jnp.abs(out - ref_bf16)))

    # 2) Full-f32 path: tight match against the f32 reference.
    out_f32 = jax.block_until_ready(
        adapter_forward(x, w_t, b, gamma, beta, compute_dtype=jnp.float32))
    ref_f32 = adapter_reference(x, w_t, b, gamma, beta)
    assert jnp.allclose(out_f32, ref_f32, atol=1e-5, rtol=1e-5), \
        float(jnp.max(jnp.abs(out_f32 - ref_f32)))

    # 3) K-tiled (streamed-weight) path: forced via an explicit small tile_k.
    E2 = 256
    x_big = jax.random.normal(k_x2, (B, S, E2), dtype=jnp.float32)
    bound2 = 1.0 / (E2 ** 0.5)
    w2 = jax.random.uniform(k_w, (D, E2), minval=-bound2, maxval=bound2,
                            dtype=jnp.float32)
    out_kt = jax.block_until_ready(
        adapter_forward(x_big, w2.T, b, gamma, beta,
                        tile_k=128, compute_dtype=jnp.float32))
    ref_kt = adapter_reference(x_big, w2.T, b, gamma, beta)
    assert jnp.allclose(out_kt, ref_kt, atol=5e-3, rtol=5e-3), \
        float(jnp.max(jnp.abs(out_kt - ref_kt)))

    # 4) 2-D input path (unsqueeze(1) semantics).
    out2d = jax.block_until_ready(adapter_forward(x[:, 0, :], w_t, b,
                                                  gamma, beta))
    assert out2d.shape == (B, 1, D), out2d.shape

    print("KERNEL_OK")
</pallas_src>

<mosaic_0001>
module attributes {stable_mosaic.version = 11 : i64} {
  func.func @_adapter_kernel_resident(%arg0: i32, %arg1: memref<16x32xf32, #tpu.memory_space<vmem>>, %arg2: memref<32x128xbf16, #tpu.memory_space<vmem>>, %arg3: memref<3x128xf32, #tpu.memory_space<vmem>>, %arg4: memref<16x128xf32, #tpu.memory_space<vmem>>) attributes {dimension_semantics = [#tpu.dimension_semantics<parallel>], iteration_bounds = array<i64: 1>, scalar_prefetch = 0 : i64, scratch_operands = 0 : i64, tpu.core_type = #tpu.core_type<tc>, window_params = [{transform_indices = @transform_0, window_bounds = array<i64: 16, 32>}, {pipeline_mode = #tpu.pipeline_mode<synchronous>, transform_indices = @transform_1, window_bounds = array<i64: 32, 128>}, {pipeline_mode = #tpu.pipeline_mode<synchronous>, transform_indices = @transform_2, window_bounds = array<i64: 3, 128>}, {transform_indices = @transform_3, window_bounds = array<i64: 16, 128>}]} {
    %c0 = arith.constant 0 : index
    %c0_0 = arith.constant 0 : index
    %0 = vector.load %arg1[%c0, %c0_0] : memref<16x32xf32, #tpu.memory_space<vmem>>, vector<16x32xf32>
    %1 = arith.truncf %0 : vector<16x32xf32> to vector<16x32xbf16>
    %c0_1 = arith.constant 0 : index
    %c0_2 = arith.constant 0 : index
    %2 = vector.load %arg2[%c0_1, %c0_2] : memref<32x128xbf16, #tpu.memory_space<vmem>>, vector<32x128xbf16>
    %cst = arith.constant dense<0.000000e+00> : vector<16x128xf32>
    %3 = tpu.matmul %1, %2, %cst {dimension_numbers = #tpu.dot_dimension_numbers<[1], [0], [0], [1], [0, 0, 1, 1], [], []>} : vector<16x32xbf16>, vector<32x128xbf16>, vector<16x128xf32> -> vector<16x128xf32>
    %c0_3 = arith.constant 0 : index
    %c0_4 = arith.constant 0 : index
    %4 = vector.load %arg3[%c0_3, %c0_4] : memref<3x128xf32, #tpu.memory_space<vmem>>, vector<1x128xf32>
    %5 = vector.broadcast %4 : vector<1x128xf32> to vector<16x128xf32>
    %6 = arith.addf %3, %5 : vector<16x128xf32>
    %cst_5 = arith.constant dense<0.000000e+00> : vector<16xf32>
    %7 = vector.multi_reduction <add>, %6, %cst_5 [1] : vector<16x128xf32> to vector<16xf32>
    %8 = vector.shape_cast %7 : vector<16xf32> to vector<16x1xf32>
    %cst_6 = arith.constant 3.125000e-02 : f32
    %9 = vector.broadcast %cst_6 : f32 to vector<16x1xf32>
    %10 = arith.mulf %8, %9 : vector<16x1xf32>
    %11 = vector.broadcast %10 : vector<16x1xf32> to vector<16x128xf32>
    %12 = arith.subf %6, %11 : vector<16x128xf32>
    %13 = arith.mulf %12, %12 : vector<16x128xf32>
    %cst_7 = arith.constant dense<0.000000e+00> : vector<16xf32>
    %14 = vector.multi_reduction <add>, %13, %cst_7 [1] : vector<16x128xf32> to vector<16xf32>
    %15 = vector.shape_cast %14 : vector<16xf32> to vector<16x1xf32>
    %16 = arith.mulf %10, %10 : vector<16x1xf32>
    %cst_8 = arith.constant 9.600000e+01 : f32
    %17 = vector.broadcast %cst_8 : f32 to vector<16x1xf32>
    %18 = arith.mulf %17, %16 : vector<16x1xf32>
    %19 = arith.subf %15, %18 : vector<16x1xf32>
    %cst_9 = arith.constant 3.125000e-02 : f32
    %20 = vector.broadcast %cst_9 : f32 to vector<16x1xf32>
    %21 = arith.mulf %19, %20 : vector<16x1xf32>
    %cst_10 = arith.constant 9.99999974E-6 : f32
    %22 = vector.broadcast %cst_10 : f32 to vector<16x1xf32>
    %23 = arith.addf %21, %22 : vector<16x1xf32>
    %24 = math.rsqrt %23 : vector<16x1xf32>
    %25 = vector.broadcast %24 : vector<16x1xf32> to vector<16x128xf32>
    %26 = arith.mulf %12, %25 : vector<16x128xf32>
    %c1 = arith.constant 1 : index
    %c0_11 = arith.constant 0 : index
    %27 = vector.load %arg3[%c1, %c0_11] : memref<3x128xf32, #tpu.memory_space<vmem>>, vector<1x128xf32>
    %28 = vector.broadcast %27 : vector<1x128xf32> to vector<16x128xf32>
    %29 = arith.mulf %26, %28 : vector<16x128xf32>
    %c2 = arith.constant 2 : index
    %c0_12 = arith.constant 0 : index
    %30 = vector.load %arg3[%c2, %c0_12] : memref<3x128xf32, #tpu.memory_space<vmem>>, vector<1x128xf32>
    %31 = vector.broadcast %30 : vector<1x128xf32> to vector<16x128xf32>
    %32 = arith.addf %29, %31 : vector<16x128xf32>
    %c0_13 = arith.constant 0 : index
    %c0_14 = arith.constant 0 : index
    %33 = vector.load %arg4[%c0_13, %c0_14] : memref<16x128xf32, #tpu.memory_space<vmem>>, vector<16x128xf32>
    tpu.vector_store %arg4[%c0_13, %c0_14], %32 {strides = array<i32>} : memref<16x128xf32, #tpu.memory_space<vmem>>, vector<16x128xf32>,
    return
  }
  func.func @transform_0(%arg0: i32) -> (i32, i32) {
    %c0_i32 = arith.constant 0 : i32
    %c0_i32_0 = arith.constant 0 : i32
    return %arg0, %c0_i32 : i32, i32
  }
  func.func @transform_1(%arg0: i32) -> (i32, i32) {
    %c0_i32 = arith.constant 0 : i32
    %c0_i32_0 = arith.constant 0 : i32
    %c0_i32_1 = arith.constant 0 : i32
    return %c0_i32, %c0_i32_0 : i32, i32
  }
  func.func @transform_2(%arg0: i32) -> (i32, i32) {
    %c0_i32 = arith.constant 0 : i32
    %c0_i32_0 = arith.constant 0 : i32
    %c0_i32_1 = arith.constant 0 : i32
    return %c0_i32, %c0_i32_0 : i32, i32
  }
  func.func @transform_3(%arg0: i32) -> (i32, i32) {
    %c0_i32 = arith.constant 0 : i32
    %c0_i32_0 = arith.constant 0 : i32
    return %arg0, %c0_i32 : i32, i32
  }
}

</mosaic_0001>

<llo_original>
// kernel: tpu_custom_call.1
$region0: #{tpu_custom_call.1}
  #allocation0 [shape = 'u32[]', space=smem, size = 0x4, offset = 0x4, fixed_abs, tag = 'smem constant byte address 0x4 - core index']
  #allocation1 [shape = 'u32[144,128]{1,0:T(1,128)}', space=vmem, size = 0x12000, scoped, tag = 'internal scratch']
  %s0 = inlined_call_operand.hbm [shape: f32[16,32], index: 0, kind: input, shape index: {}]
  %s1 = inlined_call_operand.hbm [shape: bf16[32,128], index: 1, kind: input, shape index: {}]
  %s2 = inlined_call_operand.hbm [shape: f32[3,128], index: 2, kind: input, shape index: {}]
  %s3 = inlined_call_operand.hbm [shape: f32[16,128], index: 3, kind: output, shape index: {}]
  %s4 = sld [smem:[#allocation0]]
  $region34: #{tpu_custom_call.1} parent=0
    _
  %s6 = ssub.s32 1, %s4
  %s7 = scalar_select 0, %s6, %s4
  $region1: #{tpu_custom_call.1} parent=0
    #allocation2 [shape = 'u8[8192]{0}', space=vmem, size = 0x2000, scoped, tag = 'input window, operand 0, single buffered']
    #allocation3 [shape = 's32[1]{0}', space=sflag, size = 0x4, scoped, tag = 'scoped memory for tpu_custom_call.1']
    #allocation4 [shape = 's32[1]{0}', space=sflag, size = 0x4, scoped, tag = 'scoped memory for tpu_custom_call.1']
    #allocation5 [shape = 'u8[8192]{0}', space=vmem, size = 0x2000, scoped, tag = 'input window, operand 1, single buffered']
    #allocation6 [shape = 's32[1]{0}', space=sflag, size = 0x4, scoped, tag = 'scoped memory for tpu_custom_call.1']
    #allocation7 [shape = 'u8[2048]{0}', space=vmem, size = 0x800, scoped, tag = 'input window, operand 2, single buffered']
    #allocation8 [shape = 'u8[8192]{0}', space=vmem, size = 0x2000, scoped, tag = 'output window, operand 0, single buffered']
    %8 = vsyncpa [#allocation3], 0
    %9 = vsyncpa [#allocation6], 0
    %10 = vsyncpa [#allocation4], 0
    // Predicated region
    $region2: #{tpu_custom_call.1} parent=1 // pred_check
      _
    $region3: #{tpu_custom_call.1} parent=1 // pred_check_branch
      %12 = sbr.rel (0) target = $region5
    $region4: #{tpu_custom_call.1} parent=1 // pred_region
      %s14 = ssub.s32 256, 256
      %15 = vsyncadd [#allocation3], %s14
      %s16 = sshll.u32 [#allocation2], 4
      %s17 = int_to_ptr.vmem [resolvable:$true] %s16
      %22 = dma.hbm_to_vmem [thread:$0]  %s0, 256, %s17, [#allocation3], 128, 128, 8
    $region5: #{tpu_custom_call.1} parent=1 // pred_fallthru
      _
    // Predicated region
    $region6: #{tpu_custom_call.1} parent=1 // pred_check
      _
    $region7: #{tpu_custom_call.1} parent=1 // pred_check_branch
      %24 = sbr.rel (0) target = $region9
    $region8: #{tpu_custom_call.1} parent=1 // pred_region
      %s26 = ssub.s32 256, 256
      %27 = vsyncadd [#allocation6], %s26
      %s28 = sshll.u32 [#allocation5], 4
      %s29 = int_to_ptr.vmem [resolvable:$true] %s28
      %34 = dma.hbm_to_vmem [thread:$0]  %s1, 256, %s29, [#allocation6], 64, 64, 4
    $region9: #{tpu_custom_call.1} parent=1 // pred_fallthru
      _
    // Predicated region
    $region10: #{tpu_custom_call.1} parent=1 // pred_check
      _
    $region11: #{tpu_custom_call.1} parent=1 // pred_check_branch
      %36 = sbr.rel (0) target = $region13
    $region12: #{tpu_custom_call.1} parent=1 // pred_region
      %s38 = ssub.s32 64, 64
      %39 = vsyncadd [#allocation6], %s38
      %s41 = sshll.u32 [#allocation7], 4
      %s42 = int_to_ptr.vmem [resolvable:$true] %s41
      %44 = dma.hbm_to_vmem [thread:$0]  %s2, 64, %s42, [#allocation6]
    $region13: #{tpu_custom_call.1} parent=1 // pred_fallthru
      _
    // Predicated region
    $region14: #{tpu_custom_call.1} parent=1 // pred_check
      _
    $region15: #{tpu_custom_call.1} parent=1 // pred_check_branch
      %46 = sbr.rel (0) target = $region17
    $region16: #{tpu_custom_call.1} parent=1 // pred_region
      %47 = dma.done [#allocation3], 256
    $region17: #{tpu_custom_call.1} parent=1 // pred_fallthru
      _
    // Predicated region
    $region18: #{tpu_custom_call.1} parent=1 // pred_check
      _
    $region19: #{tpu_custom_call.1} parent=1 // pred_check_branch
      %49 = sbr.rel (0) target = $region21
    $region20: #{tpu_custom_call.1} parent=1 // pred_region
      %50 = dma.done [#allocation6], 256
    $region21: #{tpu_custom_call.1} parent=1 // pred_fallthru
      _
    // Predicated region
    $region22: #{tpu_custom_call.1} parent=1 // pred_check
      _
    $region23: #{tpu_custom_call.1} parent=1 // pred_check_branch
      %52 = sbr.rel (0) target = $region25
    $region24: #{tpu_custom_call.1} parent=1 // pred_region
      %53 = dma.done [#allocation6], 64
    $region25: #{tpu_custom_call.1} parent=1 // pred_fallthru
      _
    %v55 = vld [vmem:[#allocation2] sm:$0xff]
    %v56 = vld [vmem:[#allocation2 + $0x8] sm:$0xff]
    %v57 = vpack.c.bf16 %v56, %v55
    %v58 = vld [vmem:[#allocation5] sm:$0xf]
    %v59 = vld [vmem:[#allocation5 + $0x4] sm:$0xf]
    %v60 = vld [vmem:[#allocation5 + $0x8] sm:$0xf]
    %v61 = vld [vmem:[#allocation5 + $0xc] sm:$0xf]
    %v62 = vld [vmem:[#allocation7] sm:$0x1]
    %v63 = vlaneseq
    %v64 = vshrl.u32 %v63, 7
    %v65 = vsub.s32 0, %v64
    %v66 = vrot.slane %v62, %v65
    %v71 = vunpack.c.l.b16 %v58
    %v72 = vunpack.c.l.b16 %v59
    %v73 = vunpack.c.l.b16 %v60
    %v74 = vunpack.c.l.b16 %v61
    %v75 = vpack.c.b16 %v72, %v71
    %v76 = vpack.c.b16 %v74, %v73
    %vm79 = vcmask 261120
    %v81 = vsel %vm79, %v57, 0
    %83 = vmatprep.subr.bf16.mxu0 0
    %84 = vmatpush1.bf16.msra.mxu0 0
    %85 = vmatprep.subr.bf16.mxu0 0
    %86 = vmatpush1.bf16.msra.mxu0 0
    %87 = vmatprep.subr.bf16.mxu0 0
    %88 = vmatpush1.bf16.msra.mxu0 0
    %89 = vmatprep.subr.bf16.mxu0 0
    %90 = vmatpush1.bf16.msra.mxu0 0
    %91 = vmatprep.subr.bf16.mxu0 0
    %92 = vmatpush1.bf16.msra.mxu0 0
    %93 = vmatprep.subr.bf16.mxu0 0
    %94 = vmatpush1.bf16.msra.mxu0 0
    %95 = vmatprep.subr.bf16.mxu0 0
    %96 = vmatpush1.bf16.msra.mxu0 %v76
    %97 = vmatprep.subr.bf16.mxu0 0
    %98 = vmatpush1.bf16.msra.mxu0 %v75
    %99 = vmatprep.subr.bf16.mxu0 0
    %100 = vmatpush2.bf16.msra.mxu0 0
    %101 = vmatprep.subr.bf16.mxu0 0
    %102 = vmatpush2.bf16.msra.mxu0 0
    %103 = vmatprep.subr.bf16.mxu0 0
    %104 = vmatpush2.bf16.msra.mxu0 0
    %105 = vmatprep.subr.bf16.mxu0 0
    %106 = vmatpush2.bf16.msra.mxu0 0
    %107 = vmatprep.subr.bf16.mxu0 0
    %108 = vmatpush2.bf16.msra.mxu0 0
    %109 = vmatprep.subr.bf16.mxu0 0
    %110 = vmatpush2.bf16.msra.mxu0 0
    %111 = vmatprep.subr.bf16.mxu0 0
    %112 = vmatpush2.bf16.msra.mxu0 0
    %113 = vmatprep.subr.bf16.mxu0 0
    %114 = vmatpush2.bf16.msra.mxu0 0
    %115 = vmatprep.mubr.bf16.mxu0 0
    %116 = vmatmul.mubr.bf16.gmra.mxu0 %v81
    %v117 = vpop.f32.mrf.mxu0
    %v118 = vadd.f32 %v66, %v117
    %v119 = vpop.f32.mrf.mxu0
    %v120 = vpop.f32.mrf.mxu0
    %v121 = vadd.f32 %v66, %v120
    %v122 = vpop.f32.mrf.mxu0
    %123 = vdwg.mxu0
    %124 = vadd.xlane.f32.xlu0 %v118
    %v125 = vpop.xlane.xlu0 %124
    %126 = vadd.xlane.f32.xlu0 %v121
    %v127 = vpop.xlane.xlu0 %126
    %v128 = vmul.f32 %v125, 0.03125
    %v129 = vmul.f32 %v127, 0.03125
    %v130 = vsub.f32 %v118, %v128
    %v131 = vsub.f32 %v121, %v129
    %v132 = vmul.f32 %v130, %v130
    %v133 = vmul.f32 %v131, %v131
    %134 = vadd.xlane.f32.xlu0 %v132
    %v135 = vpop.xlane.xlu0 %134
    %136 = vadd.xlane.f32.xlu0 %v133
    %v137 = vpop.xlane.xlu0 %136
    %v138 = vmul.f32 %v128, %v128
    %v139 = vmul.f32 %v129, %v129
    %v140 = vmul.f32 %v138, 96.0
    %v141 = vmul.f32 %v139, 96.0
    %v142 = vsub.f32 %v135, %v140
    %v143 = vsub.f32 %v137, %v141
    %v144 = vmul.f32 %v142, 0.03125
    %v145 = vmul.f32 %v143, 0.03125
    %v146 = vadd.f32 %v144, 1e-05
    %v147 = vadd.f32 %v145, 1e-05
    %v148 = vrsqrt.pop %v146
    %v149 = vrsqrt.pop %v147
    %v150 = vmul.f32 %v130, %v148
    %v151 = vmul.f32 %v131, %v149
    %v152 = vld [vmem:[#allocation7 + $0x1] sm:$0x1]
    %v153 = vlaneseq
    %v154 = vshrl.u32 %v153, 7
    %v155 = vsub.s32 0, %v154
    %v156 = vrot.slane %v152, %v155
    %v157 = vmul.f32 %v150, %v156
    %v158 = vmul.f32 %v151, %v156
    %v159 = vld [vmem:[#allocation7 + $0x2] sm:$0x1]
    %v160 = vlaneseq
    %v161 = vshrl.u32 %v160, 7
    %v162 = vsub.s32 0, %v161
    %v163 = vrot.slane %v159, %v162
    %v164 = vadd.f32 %v157, %v163
    %v165 = vadd.f32 %v158, %v163
    %166 = vst [vmem:[#allocation8] sm:$0xff] %v164
    %167 = vst [vmem:[#allocation8 + $0x8] sm:$0xff] %v165
    // Predicated region
    $region26: #{tpu_custom_call.1} parent=1 // pred_check
      _
    $region27: #{tpu_custom_call.1} parent=1 // pred_check_branch
      %169 = sbr.rel (0) target = $region29
    $region28: #{tpu_custom_call.1} parent=1 // pred_region
      %s171 = ssub.s32 256, 256
      %172 = vsyncadd [#allocation4], %s171
      %s173 = sshll.u32 [#allocation8], 4
      %s174 = int_to_ptr.vmem [resolvable:$true] %s173
      %179 = dma.vmem_to_hbm [thread:$0]  %s174, 256, %s3, [#allocation4], 128, 128, 8
    $region29: #{tpu_custom_call.1} parent=1 // pred_fallthru
      _
    // Predicated region
    $region30: #{tpu_custom_call.1} parent=1 // pred_check
      _
    $region31: #{tpu_custom_call.1} parent=1 // pred_check_branch
      %181 = sbr.rel (0) target = $region33
    $region32: #{tpu_custom_call.1} parent=1 // pred_region
      %182 = dma.done [#allocation4], 256
    $region33: #{tpu_custom_call.1} parent=1 // pred_fallthru
      _
    %183 = vsyncpa [#allocation3], 1
    %184 = vsyncpa [#allocation6], 1
    %185 = vsyncpa [#allocation4], 1

</llo_original>
